<compile_context>
chip_gen: v6e
topology: v6e:2x2x1
jax: 0.10.0
libtpu: 0.0.40
codegen_flags: <defaults>
</compile_context>

<pallas_src>
import functools

import jax
import jax.numpy as jnp
from jax.experimental import pallas as pl
from jax.experimental.pallas import tpu as pltpu

EPS = 1e-09            # self.eps in the module
PAIRWISE_EPS = 1e-06   # default eps of F.pairwise_distance


def _round_up(x, m):
    return ((x + m - 1) // m) * m


# ---------------------------------------------------------------------------
# Kernel bodies.  Both accumulate sum(per-pair losses) into a scalar SMEM
# output across the grid and divide by the true batch size on the last step.
# ---------------------------------------------------------------------------

def _lane_dense_kernel(o1_ref, o2_ref, lbl_ref, out_ref, *, n_valid, tile, margin):
    # o1_ref / o2_ref: (D, tile)  -- batch on the lane axis (lane-dense, D < 128)
    # lbl_ref:         (1, tile)
    i = pl.program_id(0)

    @pl.when(i == 0)
    def _init():
        out_ref[0] = jnp.float32(0.0)

    o1 = o1_ref[...].astype(jnp.float32)
    o2 = o2_ref[...].astype(jnp.float32)
    lbl = lbl_ref[...].astype(jnp.float32)                        # (1, tile)

    # F.pairwise_distance: ||x1 - x2 + 1e-6||_2 over the feature axis (axis 0 here)
    diff = o1 - o2 + PAIRWISE_EPS
    dist = jnp.sqrt(jnp.sum(diff * diff, axis=0, keepdims=True))  # (1, tile)

    # 0.5 * (label * d + (1 - label) * relu(margin - sqrt(d + eps))^2)
    hinge = jnp.maximum(margin - jnp.sqrt(dist + EPS), 0.0)
    losses = 0.5 * (lbl * dist + (1.0 - lbl) * hinge * hinge)     # (1, tile)

    # mask out padded batch entries in the (possibly partial) last tile
    col = jax.lax.broadcasted_iota(jnp.int32, (1, tile), 1) + i * tile
    losses = jnp.where(col < n_valid, losses, 0.0)

    out_ref[0] += jnp.sum(losses)

    @pl.when(i == pl.num_programs(0) - 1)
    def _fin():
        out_ref[0] = out_ref[0] * jnp.float32(1.0 / n_valid)


def _row_major_kernel(o1_ref, o2_ref, lbl_ref, out_ref, *, n_valid, tile, margin):
    # o1_ref / o2_ref: (tile, D)  -- classic row-major layout (D >= 128)
    # lbl_ref:         (tile, 1)
    i = pl.program_id(0)

    @pl.when(i == 0)
    def _init():
        out_ref[0] = jnp.float32(0.0)

    o1 = o1_ref[...].astype(jnp.float32)
    o2 = o2_ref[...].astype(jnp.float32)
    lbl = lbl_ref[...].astype(jnp.float32)                        # (tile, 1)

    diff = o1 - o2 + PAIRWISE_EPS
    dist = jnp.sqrt(jnp.sum(diff * diff, axis=1, keepdims=True))  # (tile, 1)

    hinge = jnp.maximum(margin - jnp.sqrt(dist + EPS), 0.0)
    losses = 0.5 * (lbl * dist + (1.0 - lbl) * hinge * hinge)     # (tile, 1)

    row = jax.lax.broadcasted_iota(jnp.int32, (tile, 1), 0) + i * tile
    losses = jnp.where(row < n_valid, losses, 0.0)

    out_ref[0] += jnp.sum(losses)

    @pl.when(i == pl.num_programs(0) - 1)
    def _fin():
        out_ref[0] = out_ref[0] * jnp.float32(1.0 / n_valid)


# ---------------------------------------------------------------------------
# Wrapper
# ---------------------------------------------------------------------------

def contrastive_loss(output1, output2, label, *, margin=2.0, tile=None):
    """Mean contrastive loss over the batch, computed in a single Pallas kernel."""
    B, D = output1.shape
    label = label.reshape(B).astype(jnp.float32)
    itemsize = jnp.dtype(output1.dtype).itemsize
    # ~2 MiB per input tile -> 2 inputs x 2 pipeline buffers ~= 8 MiB of VMEM,
    # comfortably under the default scoped VMEM on v5e/v6e/v7x.
    budget = 2 * 1024 * 1024

    if D < 128:
        # Lane-dense layout: batch along the 128-lane axis (fills all lanes
        # when D < 128, and the label DMA is lane-dense too).
        if tile is None:
            t = budget // (max(D, 1) * itemsize)
            t = max(128, min(4096, (t // 128) * 128))
        else:
            t = max(128, _round_up(int(tile), 128))
        t = min(t, _round_up(B, 128))
        bp = _round_up(B, t)

        o1 = jnp.pad(output1.T, ((0, 0), (0, bp - B)))
        o2 = jnp.pad(output2.T, ((0, 0), (0, bp - B)))
        lbl = jnp.pad(label, (0, bp - B)).reshape(1, bp)

        kernel = functools.partial(
            _lane_dense_kernel, n_valid=B, tile=t, margin=float(margin))
        in_specs = [
            pl.BlockSpec((D, t), lambda i: (0, i)),
            pl.BlockSpec((D, t), lambda i: (0, i)),
            pl.BlockSpec((1, t), lambda i: (0, i)),
        ]
    else:
        if tile is None:
            t = budget // (D * itemsize)
            t = max(8, min(1024, (t // 8) * 8))
        else:
            t = max(8, _round_up(int(tile), 8))
        t = min(t, _round_up(B, 8))
        bp = _round_up(B, t)

        o1 = jnp.pad(output1, ((0, bp - B), (0, 0)))
        o2 = jnp.pad(output2, ((0, bp - B), (0, 0)))
        lbl = jnp.pad(label, (0, bp - B)).reshape(bp, 1)

        kernel = functools.partial(
            _row_major_kernel, n_valid=B, tile=t, margin=float(margin))
        in_specs = [
            pl.BlockSpec((t, D), lambda i: (i, 0)),
            pl.BlockSpec((t, D), lambda i: (i, 0)),
            pl.BlockSpec((t, 1), lambda i: (i, 0)),
        ]

    grid = (bp // t,)
    out = pl.pallas_call(
        kernel,
        grid=grid,
        in_specs=in_specs,
        out_specs=pl.BlockSpec(memory_space=pltpu.MemorySpace.SMEM),
        out_shape=jax.ShapeDtypeStruct((1,), jnp.float32),
        compiler_params=pltpu.CompilerParams(
            dimension_semantics=("arbitrary",)),
    )(o1, o2, lbl)
    return out[0]


# ---------------------------------------------------------------------------
# Pure-JAX reference mirroring the PyTorch module.
# ---------------------------------------------------------------------------

def _reference(output1, output2, label, *, margin=2.0):
    o1 = output1.astype(jnp.float32)
    o2 = output2.astype(jnp.float32)
    diff = o1 - o2 + PAIRWISE_EPS
    d = jnp.sqrt(jnp.sum(diff * diff, axis=-1))
    lbl = label.astype(jnp.float32)
    hinge = jnp.maximum(margin - jnp.sqrt(d + EPS), 0.0)
    losses = 0.5 * (lbl * d + (1.0 - lbl) * hinge ** 2)
    return jnp.mean(losses)


if __name__ == "__main__":
    key = jax.random.PRNGKey(0)

    def _check(B, D, dtype=jnp.float32, tile=None, margin=2.0):
        k1, k2, k3 = jax.random.split(jax.random.fold_in(key, B * 131 + D), 3)
        o1 = jax.random.normal(k1, (B, D), dtype=jnp.float32).astype(dtype)
        o2 = jax.random.normal(k2, (B, D), dtype=jnp.float32).astype(dtype)
        lbl = jax.random.bernoulli(k3, 0.5, (B,)).astype(jnp.float32)
        got = jax.block_until_ready(
            contrastive_loss(o1, o2, lbl, margin=margin, tile=tile))
        ref = jax.block_until_ready(_reference(o1, o2, lbl, margin=margin))
        assert jnp.allclose(got, ref, atol=1e-5, rtol=1e-5), (B, D, got, ref)

    # Main small-shape demo (D < 128 -> lane-dense path).
    _check(8, 32)
    # Multi-tile accumulation + padded-batch masking on the lane-dense path.
    _check(300, 32, tile=128)
    # Row-major path (D >= 128), partial last tile masked.
    _check(20, 128)
    _check(100, 256, tile=32)
    # bf16 inputs in HBM, f32 accumulation inside the kernel.
    _check(64, 32, dtype=jnp.bfloat16)

    print("KERNEL_OK")
</pallas_src>

<mosaic_0001>
module attributes {stable_mosaic.version = 11 : i64} {
  func.func @_lane_dense_kernel(%arg0: i32, %arg1: memref<32x128xf32, #tpu.memory_space<vmem>>, %arg2: memref<32x128xf32, #tpu.memory_space<vmem>>, %arg3: memref<1x128xf32, #tpu.memory_space<vmem>>, %arg4: memref<1xf32, #tpu.memory_space<smem>>) attributes {dimension_semantics = [#tpu.dimension_semantics<arbitrary>], iteration_bounds = array<i64: 1>, scalar_prefetch = 0 : i64, scratch_operands = 0 : i64, tpu.core_type = #tpu.core_type<tc>, window_params = [{transform_indices = @transform_0, window_bounds = array<i64: 32, 128>}, {transform_indices = @transform_1, window_bounds = array<i64: 32, 128>}, {transform_indices = @transform_2, window_bounds = array<i64: 1, 128>}, {transform_indices = @transform_3, window_bounds = array<i64: 1>}]} {
    %c0_i32 = arith.constant 0 : i32
    %0 = arith.cmpi eq, %arg0, %c0_i32 : i32
    %1 = arith.extui %0 : i1 to i32
    %c0_i32_0 = arith.constant 0 : i32
    %2 = arith.cmpi ne, %1, %c0_i32_0 : i32
    scf.if %2 {
      %cst_18 = arith.constant 0.000000e+00 : f32
      %c0_19 = arith.constant 0 : index
      %46 = memref.load %arg4[%c0_19] : memref<1xf32, #tpu.memory_space<smem>>
      memref.store %cst_18, %arg4[%c0_19] : memref<1xf32, #tpu.memory_space<smem>>
    } else {
    }
    %c0 = arith.constant 0 : index
    %c0_1 = arith.constant 0 : index
    %3 = vector.load %arg1[%c0, %c0_1] : memref<32x128xf32, #tpu.memory_space<vmem>>, vector<32x128xf32>
    %c0_2 = arith.constant 0 : index
    %c0_3 = arith.constant 0 : index
    %4 = vector.load %arg2[%c0_2, %c0_3] : memref<32x128xf32, #tpu.memory_space<vmem>>, vector<32x128xf32>
    %c0_4 = arith.constant 0 : index
    %c0_5 = arith.constant 0 : index
    %5 = vector.load %arg3[%c0_4, %c0_5] : memref<1x128xf32, #tpu.memory_space<vmem>>, vector<1x128xf32>
    %6 = arith.subf %3, %4 : vector<32x128xf32>
    %cst = arith.constant 9.99999997E-7 : f32
    %7 = vector.broadcast %cst : f32 to vector<32x128xf32>
    %8 = arith.addf %6, %7 : vector<32x128xf32>
    %9 = arith.mulf %8, %8 : vector<32x128xf32>
    %cst_6 = arith.constant dense<0.000000e+00> : vector<128xf32>
    %10 = vector.multi_reduction <add>, %9, %cst_6 [0] : vector<32x128xf32> to vector<128xf32>
    %11 = vector.shape_cast %10 : vector<128xf32> to vector<1x128xf32>
    %12 = math.sqrt %11 : vector<1x128xf32>
    %cst_7 = arith.constant 9.99999971E-10 : f32
    %13 = vector.broadcast %cst_7 : f32 to vector<1x128xf32>
    %14 = arith.addf %12, %13 : vector<1x128xf32>
    %15 = math.sqrt %14 : vector<1x128xf32>
    %cst_8 = arith.constant 2.000000e+00 : f32
    %16 = vector.broadcast %cst_8 : f32 to vector<1x128xf32>
    %17 = arith.subf %16, %15 : vector<1x128xf32>
    %cst_9 = arith.constant 0.000000e+00 : f32
    %18 = vector.broadcast %cst_9 : f32 to vector<1x128xf32>
    %19 = arith.maximumf %17, %18 : vector<1x128xf32>
    %20 = arith.mulf %5, %12 : vector<1x128xf32>
    %cst_10 = arith.constant 1.000000e+00 : f32
    %21 = vector.broadcast %cst_10 : f32 to vector<1x128xf32>
    %22 = arith.subf %21, %5 : vector<1x128xf32>
    %23 = arith.mulf %22, %19 : vector<1x128xf32>
    %24 = arith.mulf %23, %19 : vector<1x128xf32>
    %25 = arith.addf %20, %24 : vector<1x128xf32>
    %cst_11 = arith.constant 5.000000e-01 : f32
    %26 = vector.broadcast %cst_11 : f32 to vector<1x128xf32>
    %27 = arith.mulf %26, %25 : vector<1x128xf32>
    %28 = tpu.iota {dimensions = array<i32: 1>} : vector<1x128xi32>
    %c128_i32 = arith.constant 128 : i32
    %29 = arith.muli %arg0, %c128_i32 : i32
    %30 = vector.broadcast %29 : i32 to vector<1x128xi32>
    %31 = arith.addi %28, %30 : vector<1x128xi32>
    %c8_i32 = arith.constant 8 : i32
    %32 = vector.broadcast %c8_i32 : i32 to vector<1x128xi32>
    %33 = arith.cmpi slt, %31, %32 : vector<1x128xi32>
    %cst_12 = arith.constant 0.000000e+00 : f32
    %34 = vector.broadcast %cst_12 : f32 to vector<1x128xf32>
    %35 = arith.select %33, %27, %34 : vector<1x128xi1>, vector<1x128xf32>
    %c0_13 = arith.constant 0 : index
    %36 = memref.load %arg4[%c0_13] : memref<1xf32, #tpu.memory_space<smem>>
    %37 = vector.shape_cast %35 : vector<1x128xf32> to vector<1x1x128xf32>
    %cst_14 = arith.constant dense<0.000000e+00> : vector<1xf32>
    %38 = vector.multi_reduction <add>, %37, %cst_14 [1, 2] : vector<1x1x128xf32> to vector<1xf32>
    %39 = vector.shape_cast %38 : vector<1xf32> to vector<1x1x1xf32>
    %40 = vector.extract %39[0, 0, 0] : f32 from vector<1x1x1xf32>
    %41 = arith.addf %36, %40 : f32
    %c0_15 = arith.constant 0 : index
    %42 = memref.load %arg4[%c0_15] : memref<1xf32, #tpu.memory_space<smem>>
    memref.store %41, %arg4[%c0_15] : memref<1xf32, #tpu.memory_space<smem>>
    %c0_i32_16 = arith.constant 0 : i32
    %43 = arith.cmpi eq, %arg0, %c0_i32_16 : i32
    %44 = arith.extui %43 : i1 to i32
    %c0_i32_17 = arith.constant 0 : i32
    %45 = arith.cmpi ne, %44, %c0_i32_17 : i32
    scf.if %45 {
      %c0_18 = arith.constant 0 : index
      %46 = memref.load %arg4[%c0_18] : memref<1xf32, #tpu.memory_space<smem>>
      %cst_19 = arith.constant 1.250000e-01 : f32
      %47 = arith.mulf %46, %cst_19 : f32
      %c0_20 = arith.constant 0 : index
      %48 = memref.load %arg4[%c0_20] : memref<1xf32, #tpu.memory_space<smem>>
      memref.store %47, %arg4[%c0_20] : memref<1xf32, #tpu.memory_space<smem>>
    } else {
    }
    return
  }
  func.func @transform_0(%arg0: i32) -> (i32, i32) {
    %c0_i32 = arith.constant 0 : i32
    %c0_i32_0 = arith.constant 0 : i32
    return %c0_i32, %arg0 : i32, i32
  }
  func.func @transform_1(%arg0: i32) -> (i32, i32) {
    %c0_i32 = arith.constant 0 : i32
    %c0_i32_0 = arith.constant 0 : i32
    return %c0_i32, %arg0 : i32, i32
  }
  func.func @transform_2(%arg0: i32) -> (i32, i32) {
    %c0_i32 = arith.constant 0 : i32
    %c0_i32_0 = arith.constant 0 : i32
    return %c0_i32, %arg0 : i32, i32
  }
  func.func @transform_3(%arg0: i32) -> i32 {
    %c0_i32 = arith.constant 0 : i32
    %c0_i32_0 = arith.constant 0 : i32
    return %c0_i32 : i32
  }
}

</mosaic_0001>

<llo_original>
// kernel: tpu_custom_call.1
$region0: #{tpu_custom_call.1}
  #allocation0 [shape = 'u32[]', space=smem, size = 0x4, offset = 0x4, fixed_abs, tag = 'smem constant byte address 0x4 - core index']
  #allocation1 [shape = 'u32[144,128]{1,0:T(1,128)}', space=vmem, size = 0x12000, scoped, tag = 'internal scratch']
  %s0 = inlined_call_operand.hbm [shape: f32[32,128], index: 0, kind: input, shape index: {}]
  %s1 = inlined_call_operand.hbm [shape: f32[32,128], index: 1, kind: input, shape index: {}]
  %s2 = inlined_call_operand.vmem [shape: f32[1,128], index: 2, kind: input, shape index: {}]
  %s3 = inlined_call_operand.hbm [shape: f32[1], index: 3, kind: output, shape index: {}]
  %s4 = sld [smem:[#allocation0]]
  $region38: #{tpu_custom_call.1} parent=0
    _
  %s6 = ssub.s32 1, %s4
  %s7 = scalar_select 0, %s6, %s4
  $region1: #{tpu_custom_call.1} parent=0
    #allocation2 [shape = 'u8[16384]{0}', space=vmem, size = 0x4000, scoped, tag = 'input window, operand 0, single buffered']
    #allocation3 [shape = 's32[1]{0}', space=sflag, size = 0x4, scoped, tag = 'scoped memory for tpu_custom_call.1']
    #allocation4 [shape = 's32[1]{0}', space=sflag, size = 0x4, scoped, tag = 'scoped memory for tpu_custom_call.1']
    #allocation5 [shape = 'u8[16384]{0}', space=vmem, size = 0x4000, scoped, tag = 'input window, operand 1, single buffered']
    #allocation6 [shape = 's32[1]{0}', space=sflag, size = 0x4, scoped, tag = 'scoped memory for tpu_custom_call.1']
    #allocation7 [shape = 'u8[512]{0}', space=smem, size = 0x200, scoped, tag = 'output window, operand 0, single buffered']
    %8 = vsyncpa [#allocation3], 0
    %9 = vsyncpa [#allocation6], 0
    %10 = vsyncpa [#allocation4], 0
    // Predicated region
    $region2: #{tpu_custom_call.1} parent=1 // pred_check
      _
    $region3: #{tpu_custom_call.1} parent=1 // pred_check_branch
      %12 = sbr.rel (0) target = $region5
    $region4: #{tpu_custom_call.1} parent=1 // pred_region
      %s14 = ssub.s32 512, 512
      %15 = vsyncadd [#allocation3], %s14
      %s16 = sshll.u32 [#allocation2], 4
      %s17 = int_to_ptr.vmem [resolvable:$true] %s16
      %22 = dma.hbm_to_vmem [thread:$0]  %s0, 512, %s17, [#allocation3], 128, 128, 8
    $region5: #{tpu_custom_call.1} parent=1 // pred_fallthru
      _
    // Predicated region
    $region6: #{tpu_custom_call.1} parent=1 // pred_check
      _
    $region7: #{tpu_custom_call.1} parent=1 // pred_check_branch
      %24 = sbr.rel (0) target = $region9
    $region8: #{tpu_custom_call.1} parent=1 // pred_region
      %s26 = ssub.s32 512, 512
      %27 = vsyncadd [#allocation6], %s26
      %s28 = sshll.u32 [#allocation5], 4
      %s29 = int_to_ptr.vmem [resolvable:$true] %s28
      %34 = dma.hbm_to_vmem [thread:$0]  %s1, 512, %s29, [#allocation6], 128, 128, 8
    $region9: #{tpu_custom_call.1} parent=1 // pred_fallthru
      _
    // Predicated region
    $region10: #{tpu_custom_call.1} parent=1 // pred_check
      _
    $region11: #{tpu_custom_call.1} parent=1 // pred_check_branch
      %36 = sbr.rel (0) target = $region13
    $region12: #{tpu_custom_call.1} parent=1 // pred_region
      _
    $region13: #{tpu_custom_call.1} parent=1 // pred_fallthru
      _
    // Predicated region
    $region14: #{tpu_custom_call.1} parent=1 // pred_check
      _
    $region15: #{tpu_custom_call.1} parent=1 // pred_check_branch
      %38 = sbr.rel (0) target = $region17
    $region16: #{tpu_custom_call.1} parent=1 // pred_region
      %39 = dma.done [#allocation3], 512
    $region17: #{tpu_custom_call.1} parent=1 // pred_fallthru
      _
    // Predicated region
    $region18: #{tpu_custom_call.1} parent=1 // pred_check
      _
    $region19: #{tpu_custom_call.1} parent=1 // pred_check_branch
      %41 = sbr.rel (0) target = $region21
    $region20: #{tpu_custom_call.1} parent=1 // pred_region
      %42 = dma.done [#allocation6], 512
    $region21: #{tpu_custom_call.1} parent=1 // pred_fallthru
      _
    %p43 = scmp.eq.s32.totalorder 0, 0
    // Predicated region
    $region22: #{tpu_custom_call.1} parent=1 // pred_check
      %p44 = pneg %p43
    $region23: #{tpu_custom_call.1} parent=1 // pred_check_branch
      %46 = sbr.rel (%p44) target = $region25
    $region24: #{tpu_custom_call.1} parent=1 // pred_region
      %s47 = scalar_lea.smem [#allocation7], 0
      %48 = sst [smem:[%s47]] 0.0
    $region25: #{tpu_custom_call.1} parent=1 // pred_fallthru
      _
    %v49 = vld [vmem:[#allocation2] sm:$0xff]
    %v50 = vld [vmem:[#allocation2 + $0x8] sm:$0xff]
    %v51 = vld [vmem:[#allocation2 + $0x10] sm:$0xff]
    %v52 = vld [vmem:[#allocation2 + $0x18] sm:$0xff]
    %v53 = vld [vmem:[#allocation5] sm:$0xff]
    %v54 = vld [vmem:[#allocation5 + $0x8] sm:$0xff]
    %v55 = vld [vmem:[#allocation5 + $0x10] sm:$0xff]
    %v56 = vld [vmem:[#allocation5 + $0x18] sm:$0xff]
    %v57 = vld [vmem:[%s2] sm:$0x1]
    %v58 = vsub.f32 %v49, %v53
    %v59 = vsub.f32 %v50, %v54
    %v60 = vsub.f32 %v51, %v55
    %v61 = vsub.f32 %v52, %v56
    %v62 = vadd.f32 %v58, 1e-06
    %v63 = vadd.f32 %v59, 1e-06
    %v64 = vadd.f32 %v60, 1e-06
    %v65 = vadd.f32 %v61, 1e-06
    %v66 = vmul.f32 %v62, %v62
    %v67 = vmul.f32 %v63, %v63
    %v68 = vmul.f32 %v64, %v64
    %v69 = vmul.f32 %v65, %v65
    %v70 = vadd.f32 %v66, %v67
    %v71 = vadd.f32 %v70, %v68
    %v72 = vadd.f32 %v71, %v69
    %v73 = vrot.slane %v72, 4
    %v74 = vadd.f32 %v72, %v73
    %v75 = vrot.slane %v74, 2
    %v76 = vadd.f32 %v74, %v75
    %v77 = vrot.slane %v76, 1
    %v78 = vadd.f32 %v76, %v77
    %v79 = vrsqrt.pop %v78
    %v80 = vmul.f32 %v78, %v79
    %vm81 = vcmp.eq.f32.partialorder %v78, inf
    %v82 = vsel %vm81, %v78, %v80
    %vm83 = vcmp.eq.f32.partialorder %v78, 0.0
    %v84 = vand.u32 %v78, 2147483648
    %v85 = vsel %vm83, %v84, %v82
    %v86 = vadd.f32 %v85, 1e-09
    %v87 = vrsqrt.pop %v86
    %v88 = vmul.f32 %v86, %v87
    %vm89 = vcmp.eq.f32.partialorder %v86, inf
    %v90 = vsel %vm89, %v86, %v88
    %vm91 = vcmp.eq.f32.partialorder %v86, 0.0
    %v92 = vand.u32 %v86, 2147483648
    %v93 = vsel %vm91, %v92, %v90
    %v94 = vsub.f32 2.0, %v93
    %v95 = vmax.f32 %v94, 0.0
    %v96 = vmul.f32 %v57, %v85
    %v97 = vsub.f32 1.0, %v57
    %v98 = vmul.f32 %v97, %v95
    %v99 = vmul.f32 %v98, %v95
    %v100 = vadd.f32 %v96, %v99
    %v101 = vmul.f32 %v100, 0.5
    %v102 = vlaneseq
    %v103 = vand.u32 %v102, 127
    %s104 = smul.u32 0, 128
    %v105 = vstv %s104
    %v106 = vadd.s32 %v103, %v105
    %vm107 = vcmp.lt.s32.totalorder %v106, 8
    %v108 = vsel %vm107, %v101, 0.0
    %s109 = sld [smem:[#allocation7]]
    %vm110 = vcmask 1040384
    %v111 = vsel %vm110, %v108, 0.0
    %112 = vadd.xlane.f32.xlu0 %v111
    %v113 = vpop.xlane.xlu0 %112
    %v114 = vrot.slane %v113, 4
    %v115 = vadd.f32 %v113, %v114
    %v116 = vrot.slane %v115, 2
    %v117 = vadd.f32 %v115, %v116
    %v118 = vrot.slane %v117, 1
    %v119 = vadd.f32 %v117, %v118
    %s120 = vtos %v119
    %s121 = sadd.f32 %s109, %s120
    %s122 = scalar_lea.smem [#allocation7], 0
    %123 = sst [smem:[%s122]] %s121
    // Predicated region
    $region26: #{tpu_custom_call.1} parent=1 // pred_check
      %p124 = pneg %p43
    $region27: #{tpu_custom_call.1} parent=1 // pred_check_branch
      %126 = sbr.rel (%p124) target = $region29
    $region28: #{tpu_custom_call.1} parent=1 // pred_region
      %s127 = sld [smem:[#allocation7]]
      %s128 = smul.f32 %s127, 0.125
      %129 = sst [smem:[%s122]] %s128
    $region29: #{tpu_custom_call.1} parent=1 // pred_fallthru
      _
    // Predicated region
    $region30: #{tpu_custom_call.1} parent=1 // pred_check
      _
    $region31: #{tpu_custom_call.1} parent=1 // pred_check_branch
      %131 = sbr.rel (0) target = $region33
    $region32: #{tpu_custom_call.1} parent=1 // pred_region
      %s133 = ssub.s32 16, 16
      %134 = vsyncadd [#allocation4], %s133
      %137 = dma.smem_to_hbm [#allocation7], 16, %s3, [#allocation4]
    $region33: #{tpu_custom_call.1} parent=1 // pred_fallthru
      _
    // Predicated region
    $region34: #{tpu_custom_call.1} parent=1 // pred_check
      _
    $region35: #{tpu_custom_call.1} parent=1 // pred_check_branch
      %139 = sbr.rel (0) target = $region37
    $region36: #{tpu_custom_call.1} parent=1 // pred_region
      %140 = dma.done [#allocation4], 16
    $region37: #{tpu_custom_call.1} parent=1 // pred_fallthru
      _
    %141 = sfence
    %142 = vsyncpa [#allocation3], 1
    %143 = vsyncpa [#allocation6], 1
    %144 = vsyncpa [#allocation4], 1

</llo_original>
